<compile_context>
chip_gen: v5e
topology: v5e:2x2
jax: 0.10.0
libtpu: 0.0.40
codegen_flags: <defaults>
</compile_context>

<pallas_src>
import math

import jax
import jax.numpy as jnp
from jax import lax
from jax.experimental import pallas as pl
from jax.experimental.pallas import tpu as pltpu


def _round_up(x, m):
    return (x + m - 1) // m * m


def _exact_gelu(x):
    # nn.GELU() default (approximate='none'): 0.5 * x * (1 + erf(x / sqrt(2)))
    return 0.5 * x * (1.0 + lax.erf(x * (1.0 / math.sqrt(2.0))))


def _tanh_gelu(x):
    c = math.sqrt(2.0 / math.pi)
    return 0.5 * x * (1.0 + jnp.tanh(c * (x + 0.044715 * x * x * x)))


def _make_kernel(num_layers, approx_gelu):
    gelu = _tanh_gelu if approx_gelu else _exact_gelu

    def kernel(*refs):
        # refs = (x_ref, w0, b0, w1, b1, ..., w_{L-1}, b_{L-1}, out_ref)
        x_ref = refs[0]
        out_ref = refs[-1]
        params = refs[1:-1]

        h = x_ref[...]                           # bf16 activations
        for i in range(num_layers):
            w = params[2 * i][...]               # bf16 weights (MXU-native)
            b = params[2 * i + 1][...]           # f32 bias (1, fout) -> broadcasts
            acc = jnp.dot(h, w, preferred_element_type=jnp.float32) + b   # f32
            if i < num_layers - 1:
                h = gelu(acc).astype(jnp.bfloat16)
            else:
                # Numerically stable softmax in f32 over the lane-dense last
                # axis.  Padded logits carry a -1e30 f32 bias -> exp underflows
                # to 0 and they do not perturb the denominator.
                m = jnp.max(acc, axis=-1, keepdims=True)
                e = jnp.exp(acc - m)
                denom = jnp.sum(e, axis=-1, keepdims=True)
                inv = pl.reciprocal(denom, approx=True)   # EUP slot
                inv = inv * (2.0 - denom * inv)           # Newton refine -> ~f32 exact
                h = e * inv
        out_ref[...] = h.astype(out_ref.dtype)

    return kernel


def _tpu_defaults():
    """(vmem_budget_bytes, default_max_tile_rows) for the local TPU generation."""
    try:
        vmem_cap = int(pltpu.get_tpu_info().vmem_capacity_bytes)
    except Exception:
        vmem_cap = 0
    if vmem_cap <= 0:
        vmem_cap = 64 << 20               # conservative floor (v7x per-TC VMEM)
    budget = int(0.75 * vmem_cap)         # leave compiler scratch / spill headroom

    max_tile = 256                        # fills the 256-wide MXU on v6e/v7x
    try:
        kind = jax.devices()[0].device_kind.lower()
        if "v5 lite" in kind or "v5e" in kind or "v5litepod" in kind:
            max_tile = 128                # v5e MXU is 128-wide; less vreg pressure
    except Exception:
        pass
    return budget, max_tile


def _choose_batch_tiling(batch, max_tile):
    # Balanced tiles (minimal padding); >=2 grid steps once batch >= 16 so the
    # "parallel" axis can shard across v7x's two TensorCores (costless on 1-TC
    # chips: one extra grid step is ~0.35 us).
    min_tiles = 2 if batch >= 16 else 1
    n_tiles = max(min_tiles, -(-batch // max_tile))
    tb = min(_round_up(-(-batch // n_tiles), 8), max_tile)
    batch_pad = _round_up(batch, tb)
    return tb, batch_pad


def _vmem_bytes_needed(tile_b, dims_pad):
    bf16, f32 = 2, 4
    # double-buffered activation tiles: bf16 input, f32 output
    act = 2 * tile_b * dims_pad[0] * bf16 + 2 * tile_b * dims_pad[-1] * f32
    # single-buffered resident weights (bf16) + biases (f32, padded to 8 sublanes)
    w = sum(fi * fo for fi, fo in zip(dims_pad[:-1], dims_pad[1:])) * bf16
    b = sum(8 * fo for fo in dims_pad[1:]) * f32
    # headroom for in-kernel f32 intermediates / compiler scratch
    interm = 4 * tile_b * max(dims_pad) * f32
    return act + w + b + interm


def out_linear_layers_pallas(x, weights, biases, tile_b=None, approximate_gelu=False):
    """Fused MLP forward (Linear+GELU ... Linear+Softmax).

    x:        (batch, out_channels[0]) float32
    weights:  list of (fin, fout) float32 arrays  (x @ W + b convention)
    biases:   list of (fout,) float32 arrays
    returns:  (batch, out_channels[-1]) float32 softmax probabilities
    """
    num_layers = len(weights)
    batch, in_dim = x.shape
    out_dim = weights[-1].shape[1]

    budget, default_tile = _tpu_defaults()
    max_tile = default_tile if tile_b is None else tile_b

    # ---- pad every feature dim to a 128-lane multiple (lane-dense) ----------
    dims = [in_dim] + [w.shape[1] for w in weights]
    dims_pad = [_round_up(d, 128) for d in dims]
    if max(dims_pad) >= 2048:
        # shrink live f32 intermediates / spill traffic for very wide layers
        max_tile = min(max_tile, 128)
        # TODO(synk): chunk each layer's output along N (512-lane slabs into a
        # VMEM scratch) instead of shrinking the batch tile for wide hiddens.

    # bf16 weights (MXU-native), f32 biases; zero padding keeps results exact.
    w_pad, b_pad = [], []
    for i, (w, b) in enumerate(zip(weights, biases)):
        fi, fo = w.shape
        fip, fop = dims_pad[i], dims_pad[i + 1]
        wp = jnp.zeros((fip, fop), jnp.bfloat16).at[:fi, :fo].set(w.astype(jnp.bfloat16))
        if i == num_layers - 1:
            # padded logits must be ignored by the softmax
            bp = jnp.full((fop,), -1e30, jnp.float32).at[:fo].set(b.astype(jnp.float32))
        else:
            # GELU(0) = 0 and padded weight rows/cols are 0 -> exact propagation
            bp = jnp.zeros((fop,), jnp.float32).at[:fo].set(b.astype(jnp.float32))
        w_pad.append(wp)
        b_pad.append(bp.reshape(1, fop))

    # ---- residency guard -----------------------------------------------------
    resident = (sum(w.size for w in w_pad) * 2
                + sum(8 * b.shape[1] for b in b_pad) * 4)
    if resident + 2 * 8 * (dims_pad[0] * 2 + dims_pad[-1] * 4) > budget:
        # TODO(synk): weight-streaming variant (extra "arbitrary" grid axis over
        # layers / K,N chunks) for weight stacks that outgrow per-core VMEM.
        raise NotImplementedError(
            "parameter stack too large for the VMEM-resident kernel on this TPU")

    # ---- batch tiling --------------------------------------------------------
    tb, batch_pad = _choose_batch_tiling(batch, max_tile)
    x_p = jnp.zeros((batch_pad, dims_pad[0]), jnp.bfloat16)
    x_p = x_p.at[:batch, :in_dim].set(x.astype(jnp.bfloat16))
    grid = (batch_pad // tb,)

    # ---- specs: tiled activations, single-buffered VMEM-resident params -----
    in_specs = [pl.BlockSpec((tb, dims_pad[0]), lambda i: (i, 0))]
    args = [x_p]
    for wp, bp in zip(w_pad, b_pad):
        args.append(wp)
        in_specs.append(pl.BlockSpec(wp.shape, lambda i: (0, 0),
                                     pipeline_mode=pl.Buffered(1)))
        args.append(bp)
        in_specs.append(pl.BlockSpec(bp.shape, lambda i: (0, 0),
                                     pipeline_mode=pl.Buffered(1)))
    out_specs = pl.BlockSpec((tb, dims_pad[-1]), lambda i: (i, 0))

    # ---- compiler params / cost estimate ------------------------------------
    need = _vmem_bytes_needed(tb, dims_pad)
    vmem_limit = int(min(max(need + (4 << 20), 16 << 20), budget))

    flops = 2 * batch_pad * sum(fi * fo for fi, fo in zip(dims_pad[:-1], dims_pad[1:]))
    transcendentals = batch_pad * sum(dims_pad[1:])  # erf per hidden + exp/rcp softmax
    bytes_accessed = (x_p.size * 2
                      + sum(w.size for w in w_pad) * 2
                      + sum(b.size for b in b_pad) * 4
                      + batch_pad * dims_pad[-1] * 4)

    out = pl.pallas_call(
        _make_kernel(num_layers, approximate_gelu),
        out_shape=jax.ShapeDtypeStruct((batch_pad, dims_pad[-1]), jnp.float32),
        grid=grid,
        in_specs=in_specs,
        out_specs=out_specs,
        compiler_params=pltpu.CompilerParams(
            dimension_semantics=("parallel",),
            vmem_limit_bytes=vmem_limit),
        cost_estimate=pl.CostEstimate(
            flops=int(flops),
            transcendentals=int(transcendentals),
            bytes_accessed=int(bytes_accessed)),
    )(*args)

    return out[:batch, :out_dim]


# ---------------------------- references -------------------------------------
def out_linear_layers_ref(x, weights, biases):
    """Pure-JAX f32 reference matching the PyTorch module semantics."""
    h = x
    n = len(weights)
    for i, (w, b) in enumerate(zip(weights, biases)):
        h = h @ w + b
        if i < n - 1:
            h = _exact_gelu(h)
        else:
            h = jax.nn.softmax(h, axis=-1)
    return h


def out_linear_layers_ref_bf16(x, weights, biases):
    """Reference with the same bf16-input / f32-accumulate numerics as the kernel."""
    h = x.astype(jnp.bfloat16)
    n = len(weights)
    for i, (w, b) in enumerate(zip(weights, biases)):
        z = jnp.dot(h, w.astype(jnp.bfloat16),
                    preferred_element_type=jnp.float32) + b
        if i < n - 1:
            h = _exact_gelu(z).astype(jnp.bfloat16)
        else:
            h = jax.nn.softmax(z, axis=-1)
    return h


def init_params(key, out_channels):
    """nn.Linear-style init: U(-1/sqrt(fin), 1/sqrt(fin)); W stored as (fin, fout)."""
    weights, biases = [], []
    for fin, fout in zip(out_channels[:-1], out_channels[1:]):
        key, kw, kb = jax.random.split(key, 3)
        bound = 1.0 / math.sqrt(fin)
        weights.append(jax.random.uniform(kw, (fin, fout), jnp.float32, -bound, bound))
        biases.append(jax.random.uniform(kb, (fout,), jnp.float32, -bound, bound))
    return weights, biases


if __name__ == "__main__":
    # out_channels as the module's __init__ expects: a list of layer widths.
    out_channels = [32, 64, 16, 4]
    batch = 8

    key = jax.random.PRNGKey(0)
    key, kx = jax.random.split(key)
    x = jax.random.normal(kx, (batch, out_channels[0]), dtype=jnp.float32)

    weights, biases = init_params(key, out_channels)

    y = out_linear_layers_pallas(x, weights, biases)
    y = jax.block_until_ready(y)

    y_ref16 = out_linear_layers_ref_bf16(x, weights, biases)   # numerics-matched
    y_ref32 = out_linear_layers_ref(x, weights, biases)        # module-exact f32

    assert y.shape == (batch, out_channels[-1])
    assert bool(jnp.all(jnp.isfinite(y)))
    # rows of softmax output sum to 1 (normalization done in f32)
    assert jnp.allclose(jnp.sum(y, axis=-1), 1.0, atol=1e-5)
    # kernel matches the bf16-input / f32-accumulate reference tightly
    assert jnp.allclose(y, y_ref16, atol=2e-3), "mismatch vs bf16-matched reference"
    # and the full-f32 module reference within bf16 rounding
    assert jnp.allclose(y, y_ref32, atol=5e-2), "mismatch vs f32 reference"

    print("KERNEL_OK")
</pallas_src>

<mosaic_0001>
module attributes {stable_mosaic.version = 11 : i64} {
  func.func @kernel(%arg0: i32, %arg1: memref<8x128xbf16, #tpu.memory_space<vmem>>, %arg2: memref<128x128xbf16, #tpu.memory_space<vmem>>, %arg3: memref<1x128xf32, #tpu.memory_space<vmem>>, %arg4: memref<128x128xbf16, #tpu.memory_space<vmem>>, %arg5: memref<1x128xf32, #tpu.memory_space<vmem>>, %arg6: memref<128x128xbf16, #tpu.memory_space<vmem>>, %arg7: memref<1x128xf32, #tpu.memory_space<vmem>>, %arg8: memref<8x128xf32, #tpu.memory_space<vmem>>) attributes {dimension_semantics = [#tpu.dimension_semantics<parallel>], iteration_bounds = array<i64: 1>, scalar_prefetch = 0 : i64, scratch_operands = 0 : i64, tpu.core_type = #tpu.core_type<tc>, window_params = [{transform_indices = @transform_0, window_bounds = array<i64: 8, 128>}, {pipeline_mode = #tpu.pipeline_mode<synchronous>, transform_indices = @transform_1, window_bounds = array<i64: 128, 128>}, {pipeline_mode = #tpu.pipeline_mode<synchronous>, transform_indices = @transform_2, window_bounds = array<i64: 1, 128>}, {pipeline_mode = #tpu.pipeline_mode<synchronous>, transform_indices = @transform_3, window_bounds = array<i64: 128, 128>}, {pipeline_mode = #tpu.pipeline_mode<synchronous>, transform_indices = @transform_4, window_bounds = array<i64: 1, 128>}, {pipeline_mode = #tpu.pipeline_mode<synchronous>, transform_indices = @transform_5, window_bounds = array<i64: 128, 128>}, {pipeline_mode = #tpu.pipeline_mode<synchronous>, transform_indices = @transform_6, window_bounds = array<i64: 1, 128>}, {transform_indices = @transform_7, window_bounds = array<i64: 8, 128>}]} {
    %c0 = arith.constant 0 : index
    %c0_0 = arith.constant 0 : index
    %0 = vector.load %arg1[%c0, %c0_0] : memref<8x128xbf16, #tpu.memory_space<vmem>>, vector<8x128xbf16>
    %c0_1 = arith.constant 0 : index
    %c0_2 = arith.constant 0 : index
    %1 = vector.load %arg2[%c0_1, %c0_2] : memref<128x128xbf16, #tpu.memory_space<vmem>>, vector<128x128xbf16>
    %c0_3 = arith.constant 0 : index
    %c0_4 = arith.constant 0 : index
    %2 = vector.load %arg3[%c0_3, %c0_4] : memref<1x128xf32, #tpu.memory_space<vmem>>, vector<1x128xf32>
    %cst = arith.constant dense<0.000000e+00> : vector<8x128xf32>
    %3 = tpu.matmul %0, %1, %cst {dimension_numbers = #tpu.dot_dimension_numbers<[1], [0], [0], [1], [0, 0, 1, 1], [], []>} : vector<8x128xbf16>, vector<128x128xbf16>, vector<8x128xf32> -> vector<8x128xf32>
    %4 = vector.broadcast %2 : vector<1x128xf32> to vector<8x128xf32>
    %5 = arith.addf %3, %4 : vector<8x128xf32>
    %cst_5 = arith.constant 5.000000e-01 : f32
    %6 = vector.broadcast %cst_5 : f32 to vector<8x128xf32>
    %7 = arith.mulf %6, %5 : vector<8x128xf32>
    %cst_6 = arith.constant 0.707106769 : f32
    %8 = vector.broadcast %cst_6 : f32 to vector<8x128xf32>
    %9 = arith.mulf %5, %8 : vector<8x128xf32>
    %10 = math.erf %9 : vector<8x128xf32>
    %cst_7 = arith.constant 1.000000e+00 : f32
    %11 = vector.broadcast %cst_7 : f32 to vector<8x128xf32>
    %12 = arith.addf %11, %10 : vector<8x128xf32>
    %13 = arith.mulf %7, %12 : vector<8x128xf32>
    %14 = arith.truncf %13 : vector<8x128xf32> to vector<8x128xbf16>
    %c0_8 = arith.constant 0 : index
    %c0_9 = arith.constant 0 : index
    %15 = vector.load %arg4[%c0_8, %c0_9] : memref<128x128xbf16, #tpu.memory_space<vmem>>, vector<128x128xbf16>
    %c0_10 = arith.constant 0 : index
    %c0_11 = arith.constant 0 : index
    %16 = vector.load %arg5[%c0_10, %c0_11] : memref<1x128xf32, #tpu.memory_space<vmem>>, vector<1x128xf32>
    %cst_12 = arith.constant dense<0.000000e+00> : vector<8x128xf32>
    %17 = tpu.matmul %14, %15, %cst_12 {dimension_numbers = #tpu.dot_dimension_numbers<[1], [0], [0], [1], [0, 0, 1, 1], [], []>} : vector<8x128xbf16>, vector<128x128xbf16>, vector<8x128xf32> -> vector<8x128xf32>
    %18 = vector.broadcast %16 : vector<1x128xf32> to vector<8x128xf32>
    %19 = arith.addf %17, %18 : vector<8x128xf32>
    %cst_13 = arith.constant 5.000000e-01 : f32
    %20 = vector.broadcast %cst_13 : f32 to vector<8x128xf32>
    %21 = arith.mulf %20, %19 : vector<8x128xf32>
    %cst_14 = arith.constant 0.707106769 : f32
    %22 = vector.broadcast %cst_14 : f32 to vector<8x128xf32>
    %23 = arith.mulf %19, %22 : vector<8x128xf32>
    %24 = math.erf %23 : vector<8x128xf32>
    %cst_15 = arith.constant 1.000000e+00 : f32
    %25 = vector.broadcast %cst_15 : f32 to vector<8x128xf32>
    %26 = arith.addf %25, %24 : vector<8x128xf32>
    %27 = arith.mulf %21, %26 : vector<8x128xf32>
    %28 = arith.truncf %27 : vector<8x128xf32> to vector<8x128xbf16>
    %c0_16 = arith.constant 0 : index
    %c0_17 = arith.constant 0 : index
    %29 = vector.load %arg6[%c0_16, %c0_17] : memref<128x128xbf16, #tpu.memory_space<vmem>>, vector<128x128xbf16>
    %c0_18 = arith.constant 0 : index
    %c0_19 = arith.constant 0 : index
    %30 = vector.load %arg7[%c0_18, %c0_19] : memref<1x128xf32, #tpu.memory_space<vmem>>, vector<1x128xf32>
    %cst_20 = arith.constant dense<0.000000e+00> : vector<8x128xf32>
    %31 = tpu.matmul %28, %29, %cst_20 {dimension_numbers = #tpu.dot_dimension_numbers<[1], [0], [0], [1], [0, 0, 1, 1], [], []>} : vector<8x128xbf16>, vector<128x128xbf16>, vector<8x128xf32> -> vector<8x128xf32>
    %32 = vector.broadcast %30 : vector<1x128xf32> to vector<8x128xf32>
    %33 = arith.addf %31, %32 : vector<8x128xf32>
    %cst_21 = arith.constant dense<0xFF800000> : vector<8xf32>
    %34 = vector.multi_reduction <maximumf>, %33, %cst_21 [1] : vector<8x128xf32> to vector<8xf32>
    %35 = vector.shape_cast %34 : vector<8xf32> to vector<8x1xf32>
    %36 = vector.broadcast %35 : vector<8x1xf32> to vector<8x128xf32>
    %37 = arith.subf %33, %36 : vector<8x128xf32>
    %38 = math.exp %37 : vector<8x128xf32>
    %cst_22 = arith.constant dense<0.000000e+00> : vector<8xf32>
    %39 = vector.multi_reduction <add>, %38, %cst_22 [1] : vector<8x128xf32> to vector<8xf32>
    %40 = vector.shape_cast %39 : vector<8xf32> to vector<8x1xf32>
    %41 = tpu.reciprocal %40 {approx = true} : vector<8x1xf32> -> vector<8x1xf32>
    %42 = arith.mulf %40, %41 : vector<8x1xf32>
    %cst_23 = arith.constant 2.000000e+00 : f32
    %43 = vector.broadcast %cst_23 : f32 to vector<8x1xf32>
    %44 = arith.subf %43, %42 : vector<8x1xf32>
    %45 = arith.mulf %41, %44 : vector<8x1xf32>
    %46 = vector.broadcast %45 : vector<8x1xf32> to vector<8x128xf32>
    %47 = arith.mulf %38, %46 : vector<8x128xf32>
    %c0_24 = arith.constant 0 : index
    %c0_25 = arith.constant 0 : index
    %48 = vector.load %arg8[%c0_24, %c0_25] : memref<8x128xf32, #tpu.memory_space<vmem>>, vector<8x128xf32>
    tpu.vector_store %arg8[%c0_24, %c0_25], %47 {strides = array<i32>} : memref<8x128xf32, #tpu.memory_space<vmem>>, vector<8x128xf32>,
    return
  }
  func.func @transform_0(%arg0: i32) -> (i32, i32) {
    %c0_i32 = arith.constant 0 : i32
    %c0_i32_0 = arith.constant 0 : i32
    return %arg0, %c0_i32 : i32, i32
  }
  func.func @transform_1(%arg0: i32) -> (i32, i32) {
    %c0_i32 = arith.constant 0 : i32
    %c0_i32_0 = arith.constant 0 : i32
    %c0_i32_1 = arith.constant 0 : i32
    return %c0_i32, %c0_i32_0 : i32, i32
  }
  func.func @transform_2(%arg0: i32) -> (i32, i32) {
    %c0_i32 = arith.constant 0 : i32
    %c0_i32_0 = arith.constant 0 : i32
    %c0_i32_1 = arith.constant 0 : i32
    return %c0_i32, %c0_i32_0 : i32, i32
  }
  func.func @transform_3(%arg0: i32) -> (i32, i32) {
    %c0_i32 = arith.constant 0 : i32
    %c0_i32_0 = arith.constant 0 : i32
    %c0_i32_1 = arith.constant 0 : i32
    return %c0_i32, %c0_i32_0 : i32, i32
  }
  func.func @transform_4(%arg0: i32) -> (i32, i32) {
    %c0_i32 = arith.constant 0 : i32
    %c0_i32_0 = arith.constant 0 : i32
    %c0_i32_1 = arith.constant 0 : i32
    return %c0_i32, %c0_i32_0 : i32, i32
  }
  func.func @transform_5(%arg0: i32) -> (i32, i32) {
    %c0_i32 = arith.constant 0 : i32
    %c0_i32_0 = arith.constant 0 : i32
    %c0_i32_1 = arith.constant 0 : i32
    return %c0_i32, %c0_i32_0 : i32, i32
  }
  func.func @transform_6(%arg0: i32) -> (i32, i32) {
    %c0_i32 = arith.constant 0 : i32
    %c0_i32_0 = arith.constant 0 : i32
    %c0_i32_1 = arith.constant 0 : i32
    return %c0_i32, %c0_i32_0 : i32, i32
  }
  func.func @transform_7(%arg0: i32) -> (i32, i32) {
    %c0_i32 = arith.constant 0 : i32
    %c0_i32_0 = arith.constant 0 : i32
    return %arg0, %c0_i32 : i32, i32
  }
}

</mosaic_0001>

<llo_original>
// kernel: tpu_custom_call.1
$region0: #{tpu_custom_call.1}
  #allocation0 [shape = 'u32[]', space=smem, size = 0x4, offset = 0x4, fixed_abs, tag = 'smem constant byte address 0x4 - core index']
  #allocation1 [shape = 'u32[72,128]{1,0:T(1,128)}', space=vmem, size = 0x9000, scoped, tag = 'internal scratch']
  %s0 = inlined_call_operand.hbm [shape: bf16[8,128], index: 0, kind: input, shape index: {}]
  %s1 = inlined_call_operand.hbm [shape: bf16[128,128], index: 1, kind: input, shape index: {}]
  %s2 = inlined_call_operand.vmem [shape: f32[1,128], index: 2, kind: input, shape index: {}]
  %s3 = inlined_call_operand.hbm [shape: bf16[128,128], index: 3, kind: input, shape index: {}]
  %s4 = inlined_call_operand.vmem [shape: f32[1,128], index: 4, kind: input, shape index: {}]
  %s5 = inlined_call_operand.hbm [shape: bf16[128,128], index: 5, kind: input, shape index: {}]
  %s6 = inlined_call_operand.vmem [shape: f32[1,128], index: 6, kind: input, shape index: {}]
  %s7 = inlined_call_operand.hbm [shape: f32[8,128], index: 7, kind: output, shape index: {}]
  %s8 = sld [smem:[#allocation0]]
  $region54: #{tpu_custom_call.1} parent=0
    _
  %s10 = ssub.s32 1, %s8
  %s11 = scalar_select 0, %s10, %s8
  $region1: #{tpu_custom_call.1} parent=0
    #allocation2 [shape = 'u8[2048]{0}', space=vmem, size = 0x800, scoped, tag = 'input window, operand 0, single buffered']
    #allocation3 [shape = 's32[1]{0}', space=sflag, size = 0x4, scoped, tag = 'scoped memory for tpu_custom_call.1']
    #allocation4 [shape = 's32[1]{0}', space=sflag, size = 0x4, scoped, tag = 'scoped memory for tpu_custom_call.1']
    #allocation5 [shape = 'u8[32768]{0}', space=vmem, size = 0x8000, scoped, tag = 'input window, operand 1, single buffered']
    #allocation6 [shape = 's32[1]{0}', space=sflag, size = 0x4, scoped, tag = 'scoped memory for tpu_custom_call.1']
    #allocation7 [shape = 'u8[32768]{0}', space=vmem, size = 0x8000, scoped, tag = 'input window, operand 3, single buffered']
    #allocation8 [shape = 'u8[32768]{0}', space=vmem, size = 0x8000, scoped, tag = 'input window, operand 5, single buffered']
    #allocation9 [shape = 's32[1]{0}', space=sflag, size = 0x4, scoped, tag = 'scoped memory for tpu_custom_call.1']
    #allocation10 [shape = 'u8[4096]{0}', space=vmem, size = 0x1000, scoped, tag = 'output window, operand 0, single buffered']
    %12 = vsyncpa [#allocation3], 0
    %13 = vsyncpa [#allocation6], 0
    %14 = vsyncpa [#allocation9], 0
    %15 = vsyncpa [#allocation4], 0
    // Predicated region
    $region2: #{tpu_custom_call.1} parent=1 // pred_check
      _
    $region3: #{tpu_custom_call.1} parent=1 // pred_check_branch
      %17 = sbr.rel (0) target = $region5
    $region4: #{tpu_custom_call.1} parent=1 // pred_region
      %19 = vsyncadd [#allocation3], 0
      %s21 = sshll.u32 %s0, 4
      %s22 = int_to_ptr.hbm [resolvable:$true] %s21
      %s23 = sshll.u32 [#allocation2], 4
      %s24 = int_to_ptr.vmem [resolvable:$true] %s23
      %26 = dma.hbm_to_vmem [thread:$0]  %s22, 64, %s24, [#allocation3]
    $region5: #{tpu_custom_call.1} parent=1 // pred_fallthru
      _
    // Predicated region
    $region6: #{tpu_custom_call.1} parent=1 // pred_check
      _
    $region7: #{tpu_custom_call.1} parent=1 // pred_check_branch
      %28 = sbr.rel (0) target = $region9
    $region8: #{tpu_custom_call.1} parent=1 // pred_region
      %30 = vsyncadd [#allocation6], 0
      %s31 = sshll.u32 %s1, 4
      %s32 = int_to_ptr.hbm [resolvable:$true] %s31
      %s33 = sshll.u32 [#allocation5], 4
      %s34 = int_to_ptr.vmem [resolvable:$true] %s33
      %39 = dma.hbm_to_vmem [thread:$0]  %s32, 1024, %s34, [#allocation6], 64, 64, 4
    $region9: #{tpu_custom_call.1} parent=1 // pred_fallthru
      _
    // Predicated region
    $region10: #{tpu_custom_call.1} parent=1 // pred_check
      _
    $region11: #{tpu_custom_call.1} parent=1 // pred_check_branch
      %41 = sbr.rel (0) target = $region13
    $region12: #{tpu_custom_call.1} parent=1 // pred_region
      _
    $region13: #{tpu_custom_call.1} parent=1 // pred_fallthru
      _
    // Predicated region
    $region14: #{tpu_custom_call.1} parent=1 // pred_check
      _
    $region15: #{tpu_custom_call.1} parent=1 // pred_check_branch
      %43 = sbr.rel (0) target = $region17
    $region16: #{tpu_custom_call.1} parent=1 // pred_region
      %45 = vsyncadd [#allocation6], 0
      %s46 = sshll.u32 %s3, 4
      %s47 = int_to_ptr.hbm [resolvable:$true] %s46
      %s48 = sshll.u32 [#allocation7], 4
      %s49 = int_to_ptr.vmem [resolvable:$true] %s48
      %54 = dma.hbm_to_vmem [thread:$0]  %s47, 1024, %s49, [#allocation6], 64, 64, 4
    $region17: #{tpu_custom_call.1} parent=1 // pred_fallthru
      _
    // Predicated region
    $region18: #{tpu_custom_call.1} parent=1 // pred_check
      _
    $region19: #{tpu_custom_call.1} parent=1 // pred_check_branch
      %56 = sbr.rel (0) target = $region21
    $region20: #{tpu_custom_call.1} parent=1 // pred_region
      _
    $region21: #{tpu_custom_call.1} parent=1 // pred_fallthru
      _
    // Predicated region
    $region22: #{tpu_custom_call.1} parent=1 // pred_check
      _
    $region23: #{tpu_custom_call.1} parent=1 // pred_check_branch
      %58 = sbr.rel (0) target = $region25
    $region24: #{tpu_custom_call.1} parent=1 // pred_region
      %60 = vsyncadd [#allocation9], 0
      %s61 = sshll.u32 %s5, 4
      %s62 = int_to_ptr.hbm [resolvable:$true] %s61
      %s63 = sshll.u32 [#allocation8], 4
      %s64 = int_to_ptr.vmem [resolvable:$true] %s63
      %69 = dma.hbm_to_vmem [thread:$0]  %s62, 1024, %s64, [#allocation9], 64, 64, 4
    $region25: #{tpu_custom_call.1} parent=1 // pred_fallthru
      _
    // Predicated region
    $region26: #{tpu_custom_call.1} parent=1 // pred_check
      _
    $region27: #{tpu_custom_call.1} parent=1 // pred_check_branch
      %71 = sbr.rel (0) target = $region29
    $region28: #{tpu_custom_call.1} parent=1 // pred_region
      _
    $region29: #{tpu_custom_call.1} parent=1 // pred_fallthru
      _
    // Predicated region
    $region30: #{tpu_custom_call.1} parent=1 // pred_check
      _
    $region31: #{tpu_custom_call.1} parent=1 // pred_check_branch
      %73 = sbr.rel (0) target = $region33
    $region32: #{tpu_custom_call.1} parent=1 // pred_region
      %75 = dma.done [#allocation3], 64
    $region33: #{tpu_custom_call.1} parent=1 // pred_fallthru
      _
    // Predicated region
    $region34: #{tpu_custom_call.1} parent=1 // pred_check
      _
    $region35: #{tpu_custom_call.1} parent=1 // pred_check_branch
      %77 = sbr.rel (0) target = $region37
    $region36: #{tpu_custom_call.1} parent=1 // pred_region
      %79 = dma.done [#allocation6], 1024
    $region37: #{tpu_custom_call.1} parent=1 // pred_fallthru
      _
    // Predicated region
    $region38: #{tpu_custom_call.1} parent=1 // pred_check
      _
    $region39: #{tpu_custom_call.1} parent=1 // pred_check_branch
      %81 = sbr.rel (0) target = $region41
    $region40: #{tpu_custom_call.1} parent=1 // pred_region
      %83 = dma.done [#allocation6], 1024
    $region41: #{tpu_custom_call.1} parent=1 // pred_fallthru
      _
    // Predicated region
    $region42: #{tpu_custom_call.1} parent=1 // pred_check
      _
    $region43: #{tpu_custom_call.1} parent=1 // pred_check_branch
      %85 = sbr.rel (0) target = $region45
    $region44: #{tpu_custom_call.1} parent=1 // pred_region
      %87 = dma.done [#allocation9], 1024
    $region45: #{tpu_custom_call.1} parent=1 // pred_fallthru
      _
    %v88 = vld [vmem:[#allocation2] sm:$0xf]
    %v89 = vld [vmem:[#allocation5] sm:$0xf]
    %v90 = vld [vmem:[#allocation5 + $0x4] sm:$0xf]
    %v91 = vld [vmem:[#allocation5 + $0x8] sm:$0xf]
    %v92 = vld [vmem:[#allocation5 + $0xc] sm:$0xf]
    %v93 = vld [vmem:[#allocation5 + $0x10] sm:$0xf]
    %v94 = vld [vmem:[#allocation5 + $0x14] sm:$0xf]
    %v95 = vld [vmem:[#allocation5 + $0x18] sm:$0xf]
    %v96 = vld [vmem:[#allocation5 + $0x1c] sm:$0xf]
    %v97 = vld [vmem:[#allocation5 + $0x20] sm:$0xf]
    %v98 = vld [vmem:[#allocation5 + $0x24] sm:$0xf]
    %v99 = vld [vmem:[#allocation5 + $0x28] sm:$0xf]
    %v100 = vld [vmem:[#allocation5 + $0x2c] sm:$0xf]
    %v101 = vld [vmem:[#allocation5 + $0x30] sm:$0xf]
    %v102 = vld [vmem:[#allocation5 + $0x34] sm:$0xf]
    %v103 = vld [vmem:[#allocation5 + $0x38] sm:$0xf]
    %v104 = vld [vmem:[#allocation5 + $0x3c] sm:$0xf]
    %v105 = vld [vmem:[%s2] sm:$0x1]
    %v107 = vperm.slane %v105, 0
    %v125 = vunpack.c.l.b16 %v89
    %v126 = vunpack.c.l.b16 %v90
    %v127 = vunpack.c.l.b16 %v91
    %v128 = vunpack.c.l.b16 %v92
    %v129 = vunpack.c.l.b16 %v93
    %v130 = vunpack.c.l.b16 %v94
    %v131 = vunpack.c.l.b16 %v95
    %v132 = vunpack.c.l.b16 %v96
    %v133 = vunpack.c.l.b16 %v97
    %v134 = vunpack.c.l.b16 %v98
    %v135 = vunpack.c.l.b16 %v99
    %v136 = vunpack.c.l.b16 %v100
    %v137 = vunpack.c.l.b16 %v101
    %v138 = vunpack.c.l.b16 %v102
    %v139 = vunpack.c.l.b16 %v103
    %v140 = vunpack.c.l.b16 %v104
    %v141 = vpack.c.b16 %v126, %v125
    %v142 = vpack.c.b16 %v128, %v127
    %v143 = vpack.c.b16 %v130, %v129
    %v144 = vpack.c.b16 %v132, %v131
    %v145 = vpack.c.b16 %v134, %v133
    %v146 = vpack.c.b16 %v136, %v135
    %v147 = vpack.c.b16 %v138, %v137
    %v148 = vpack.c.b16 %v140, %v139
    %157 = vmatpush.bf16.msra.mxu0 %v148
    %158 = vmatpush.bf16.msra.mxu0 %v147
    %159 = vmatpush.bf16.msra.mxu0 %v146
    %160 = vmatpush.bf16.msra.mxu0 %v145
    %161 = vmatpush.bf16.msra.mxu0 %v144
    %162 = vmatpush.bf16.msra.mxu0 %v143
    %163 = vmatpush.bf16.msra.mxu0 %v142
    %164 = vmatpush.bf16.msra.mxu0 %v141
    %165 = vmatmul.bf16.gmra.mxu0 %v88
    %v166 = vpop.f32.mrf.mxu0
    %v167 = vadd.f32 %v107, %v166
    %v168 = vpop.f32.mrf.mxu0
    %169 = vdwg.mxu0
    %v170 = vmul.f32 %v167, 0.5
    %v171 = vmul.f32 %v167, 0.70710677
    %v172 = vmul.f32 %v171, %v171
    %v173 = vmin.f32 16.0, %v172
    %v174 = vmul.f32 %v173, 2.1237322e-06
    %v175 = vadd.f32 %v174, 0.00028619796
    %v176 = vmul.f32 %v173, %v175
    %v177 = vadd.f32 %v176, 0.0036580483
    %v178 = vmul.f32 %v173, %v177
    %v179 = vadd.f32 %v178, 0.05243302
    %v180 = vmul.f32 %v173, %v179
    %v181 = vadd.f32 %v180, 0.18741608
    %v182 = vmul.f32 %v173, %v181
    %v183 = vadd.f32 %v182, 1.1283791
    %v184 = vmul.f32 %v171, %v183
    %v185 = vmul.f32 %v173, 3.8918573e-05
    %v186 = vadd.f32 %v185, 0.001143296
    %v187 = vmul.f32 %v173, %v186
    %v188 = vadd.f32 %v187, 0.014752088
    %v189 = vmul.f32 %v173, %v188
    %v190 = vadd.f32 %v189, 0.112945676
    %v191 = vmul.f32 %v173, %v190
    %v192 = vadd.f32 %v191, 0.4994258
    %v193 = vmul.f32 %v173, %v192
    %v194 = vadd.f32 %v193, 1.0
    %v195 = vrcp.pop %v194
    %v196 = vmul.f32 %v194, %v195
    %v197 = vsub.f32 1.0, %v196
    %v198 = vmul.f32 %v195, %v197
    %v199 = vadd.f32 %v195, %v198
    %vm200 = vweird.f32 %v194
    %vm201 = vweird.f32 %v195
    %vm202 = vmor %vm200, %vm201
    %v203 = vsel %vm202, %v195, %v199
    %v204 = vand.u32 2147483647, %v194
    %vm205 = vcmp.eq.f32.partialorder %v204, 8.507059e+37
    %v206 = vand.u32 %v194, 2147483648
    %v207 = vor.u32 1.1754944e-38, %v206
    %v208 = vsel %vm205, %v207, %v203
    %v209 = vmul.f32 %v184, %v208
    %v210 = vmin.f32 %v209, 1.0
    %v211 = vmax.f32 %v210, -1.0
    %v212 = vadd.f32 %v211, 1.0
    %v213 = vmul.f32 %v170, %v212
    %v214 = vpack.c.bf16 %v213, %v213
    %v215 = vld [vmem:[#allocation7] sm:$0xf]
    %v216 = vld [vmem:[#allocation7 + $0x4] sm:$0xf]
    %v217 = vld [vmem:[#allocation7 + $0x8] sm:$0xf]
    %v218 = vld [vmem:[#allocation7 + $0xc] sm:$0xf]
    %v219 = vld [vmem:[#allocation7 + $0x10] sm:$0xf]
    %v220 = vld [vmem:[#allocation7 + $0x14] sm:$0xf]
    %v221 = vld [vmem:[#allocation7 + $0x18] sm:$0xf]
    %v222 = vld [vmem:[#allocation7 + $0x1c] sm:$0xf]
    %v223 = vld [vmem:[#allocation7 + $0x20] sm:$0xf]
    %v224 = vld [vmem:[#allocation7 + $0x24] sm:$0xf]
    %v225 = vld [vmem:[#allocation7 + $0x28] sm:$0xf]
    %v226 = vld [vmem:[#allocation7 + $0x2c] sm:$0xf]
    %v227 = vld [vmem:[#allocation7 + $0x30] sm:$0xf]
    %v228 = vld [vmem:[#allocation7 + $0x34] sm:$0xf]
    %v229 = vld [vmem:[#allocation7 + $0x38] sm:$0xf]
    %v230 = vld [vmem:[#allocation7 + $0x3c] sm:$0xf]
    %v231 = vld [vmem:[%s4] sm:$0x1]
    %v233 = vperm.slane %v231, 0
    %v251 = vunpack.c.l.b16 %v215
    %v252 = vunpack.c.l.b16 %v216
    %v253 = vunpack.c.l.b16 %v217
    %v254 = vunpack.c.l.b16 %v218
    %v255 = vunpack.c.l.b16 %v219
    %v256 = vunpack.c.l.b16 %v220
    %v257 = vunpack.c.l.b16 %v221
    %v258 = vunpack.c.l.b16 %v222
    %v259 = vunpack.c.l.b16 %v223
    %v260 = vunpack.c.l.b16 %v224
    %v261 = vunpack.c.l.b16 %v225
    %v262 = vunpack.c.l.b16 %v226
    %v263 = vunpack.c.l.b16 %v227
    %v264 = vunpack.c.l.b16 %v228
    %v265 = vunpack.c.l.b16 %v229
    %v266 = vunpack.c.l.b16 %v230
    %v267 = vpack.c.b16 %v252, %v251
    %v268 = vpack.c.b16 %v254, %v253
    %v269 = vpack.c.b16 %v256, %v255
    %v270 = vpack.c.b16 %v258, %v257
    %v271 = vpack.c.b16 %v260, %v259
    %v272 = vpack.c.b16 %v262, %v261
    %v273 = vpack.c.b16 %v264, %v263
    %v274 = vpack.c.b16 %v266, %v265
    %283 = vmatpush.bf16.msra.mxu0 %v274
    %284 = vmatpush.bf16.msra.mxu0 %v273
    %285 = vmatpush.bf16.msra.mxu0 %v272
    %286 = vmatpush.bf16.msra.mxu0 %v271
    %287 = vmatpush.bf16.msra.mxu0 %v270
    %288 = vmatpush.bf16.msra.mxu0 %v269
    %289 = vmatpush.bf16.msra.mxu0 %v268
    %290 = vmatpush.bf16.msra.mxu0 %v267
    %291 = vmatmul.bf16.gmra.mxu0 %v214
    %v292 = vpop.f32.mrf.mxu0
    %v293 = vadd.f32 %v233, %v292
    %v294 = vpop.f32.mrf.mxu0
    %295 = vdwg.mxu0
    %v296 = vmul.f32 %v293, 0.5
    %v297 = vmul.f32 %v293, 0.70710677
    %v298 = vmul.f32 %v297, %v297
    %v299 = vmin.f32 16.0, %v298
    %v300 = vmul.f32 %v299, 2.1237322e-06
    %v301 = vadd.f32 %v300, 0.00028619796
    %v302 = vmul.f32 %v299, %v301
    %v303 = vadd.f32 %v302, 0.0036580483
    %v304 = vmul.f32 %v299, %v303
    %v305 = vadd.f32 %v304, 0.05243302
    %v306 = vmul.f32 %v299, %v305
    %v307 = vadd.f32 %v306, 0.18741608
    %v308 = vmul.f32 %v299, %v307
    %v309 = vadd.f32 %v308, 1.1283791
    %v310 = vmul.f32 %v297, %v309
    %v311 = vmul.f32 %v299, 3.8918573e-05
    %v312 = vadd.f32 %v311, 0.001143296
    %v313 = vmul.f32 %v299, %v312
    %v314 = vadd.f32 %v313, 0.014752088
    %v315 = vmul.f32 %v299, %v314
    %v316 = vadd.f32 %v315, 0.112945676
    %v317 = vmul.f32 %v299, %v316
    %v318 = vadd.f32 %v317, 0.4994258
    %v319 = vmul.f32 %v299, %v318
    %v320 = vadd.f32 %v319, 1.0
    %v321 = vrcp.pop %v320
    %v322 = vmul.f32 %v320, %v321
    %v323 = vsub.f32 1.0, %v322
    %v324 = vmul.f32 %v321, %v323
    %v325 = vadd.f32 %v321, %v324
    %vm326 = vweird.f32 %v320
    %vm327 = vweird.f32 %v321
    %vm328 = vmor %vm326, %vm327
    %v329 = vsel %vm328, %v321, %v325
    %v330 = vand.u32 2147483647, %v320
    %vm331 = vcmp.eq.f32.partialorder %v330, 8.507059e+37
    %v332 = vand.u32 %v320, 2147483648
    %v333 = vor.u32 1.1754944e-38, %v332
    %v334 = vsel %vm331, %v333, %v329
    %v335 = vmul.f32 %v310, %v334
    %v336 = vmin.f32 %v335, 1.0
    %v337 = vmax.f32 %v336, -1.0
    %v338 = vadd.f32 %v337, 1.0
    %v339 = vmul.f32 %v296, %v338
    %v340 = vpack.c.bf16 %v339, %v339
    %v341 = vld [vmem:[#allocation8] sm:$0xf]
    %v342 = vld [vmem:[#allocation8 + $0x4] sm:$0xf]
    %v343 = vld [vmem:[#allocation8 + $0x8] sm:$0xf]
    %v344 = vld [vmem:[#allocation8 + $0xc] sm:$0xf]
    %v345 = vld [vmem:[#allocation8 + $0x10] sm:$0xf]
    %v346 = vld [vmem:[#allocation8 + $0x14] sm:$0xf]
    %v347 = vld [vmem:[#allocation8 + $0x18] sm:$0xf]
    %v348 = vld [vmem:[#allocation8 + $0x1c] sm:$0xf]
    %v349 = vld [vmem:[#allocation8 + $0x20] sm:$0xf]
    %v350 = vld [vmem:[#allocation8 + $0x24] sm:$0xf]
    %v351 = vld [vmem:[#allocation8 + $0x28] sm:$0xf]
    %v352 = vld [vmem:[#allocation8 + $0x2c] sm:$0xf]
    %v353 = vld [vmem:[#allocation8 + $0x30] sm:$0xf]
    %v354 = vld [vmem:[#allocation8 + $0x34] sm:$0xf]
    %v355 = vld [vmem:[#allocation8 + $0x38] sm:$0xf]
    %v356 = vld [vmem:[#allocation8 + $0x3c] sm:$0xf]
    %v357 = vld [vmem:[%s6] sm:$0x1]
    %v359 = vperm.slane %v357, 0
    %v377 = vunpack.c.l.b16 %v341
    %v378 = vunpack.c.l.b16 %v342
    %v379 = vunpack.c.l.b16 %v343
    %v380 = vunpack.c.l.b16 %v344
    %v381 = vunpack.c.l.b16 %v345
    %v382 = vunpack.c.l.b16 %v346
    %v383 = vunpack.c.l.b16 %v347
    %v384 = vunpack.c.l.b16 %v348
    %v385 = vunpack.c.l.b16 %v349
    %v386 = vunpack.c.l.b16 %v350
    %v387 = vunpack.c.l.b16 %v351
    %v388 = vunpack.c.l.b16 %v352
    %v389 = vunpack.c.l.b16 %v353
    %v390 = vunpack.c.l.b16 %v354
    %v391 = vunpack.c.l.b16 %v355
    %v392 = vunpack.c.l.b16 %v356
    %v393 = vpack.c.b16 %v378, %v377
    %v394 = vpack.c.b16 %v380, %v379
    %v395 = vpack.c.b16 %v382, %v381
    %v396 = vpack.c.b16 %v384, %v383
    %v397 = vpack.c.b16 %v386, %v385
    %v398 = vpack.c.b16 %v388, %v387
    %v399 = vpack.c.b16 %v390, %v389
    %v400 = vpack.c.b16 %v392, %v391
    %409 = vmatpush.bf16.msra.mxu0 %v400
    %410 = vmatpush.bf16.msra.mxu0 %v399
    %411 = vmatpush.bf16.msra.mxu0 %v398
    %412 = vmatpush.bf16.msra.mxu0 %v397
    %413 = vmatpush.bf16.msra.mxu0 %v396
    %414 = vmatpush.bf16.msra.mxu0 %v395
    %415 = vmatpush.bf16.msra.mxu0 %v394
    %416 = vmatpush.bf16.msra.mxu0 %v393
    %417 = vmatmul.bf16.gmra.mxu0 %v340
    %v418 = vpop.f32.mrf.mxu0
    %v419 = vadd.f32 %v359, %v418
    %v420 = vpop.f32.mrf.mxu0
    %421 = vdwg.mxu0
    %422 = vmax.xlane.f32.xlu0 %v419
    %v423 = vpop.xlane.xlu0 %422
    %v424 = vsub.f32 %v419, %v423
    %v425 = vmul.f32 %v424, 1.442695
    %v426 = vpow.pop %v425
    %427 = vadd.xlane.f32.xlu0 %v426
    %v428 = vpop.xlane.xlu0 %427
    %v429 = vrcp.pop %v428
    %v430 = vmul.f32 %v428, %v429
    %v431 = vsub.f32 2.0, %v430
    %v432 = vmul.f32 %v429, %v431
    %v433 = vmul.f32 %v426, %v432
    %434 = vst [vmem:[#allocation10] sm:$0xff] %v433
    // Predicated region
    $region46: #{tpu_custom_call.1} parent=1 // pred_check
      _
    $region47: #{tpu_custom_call.1} parent=1 // pred_check_branch
      %436 = sbr.rel (0) target = $region49
    $region48: #{tpu_custom_call.1} parent=1 // pred_region
      %438 = vsyncadd [#allocation4], 0
      %s440 = sshll.u32 [#allocation10], 4
      %s441 = int_to_ptr.vmem [resolvable:$true] %s440
      %s442 = sshll.u32 %s7, 4
      %s443 = int_to_ptr.hbm [resolvable:$true] %s442
      %445 = dma.vmem_to_hbm [thread:$0]  %s441, 128, %s443, [#allocation4]
    $region49: #{tpu_custom_call.1} parent=1 // pred_fallthru
      _
    // Predicated region
    $region50: #{tpu_custom_call.1} parent=1 // pred_check
      _
    $region51: #{tpu_custom_call.1} parent=1 // pred_check_branch
      %447 = sbr.rel (0) target = $region53
    $region52: #{tpu_custom_call.1} parent=1 // pred_region
      %449 = dma.done [#allocation4], 128
    $region53: #{tpu_custom_call.1} parent=1 // pred_fallthru
      _
    %450 = vsyncpa [#allocation3], 1
    %451 = vsyncpa [#allocation6], 1
    %452 = vsyncpa [#allocation9], 1
    %453 = vsyncpa [#allocation4], 1

</llo_original>
